<compile_context>
chip_gen: v7x
topology: tpu7x:2x2x1
jax: 0.10.0
libtpu: 0.0.40
codegen_flags: <defaults>
</compile_context>

<pallas_src>
from functools import partial

import numpy as np
import jax
import jax.numpy as jnp
from jax.experimental import pallas as pl
from jax.experimental.pallas import tpu as pltpu

N         = 8      # nodes (demo)
IN_DIM    = 16
HIDDEN    = 32     # gnn1 per-head channels (heads=2, concat -> 64)
HEADS1    = 2
OUT_DIM   = 32     # gnn2 channels (heads=1)
QDIM      = 384    # query embedding dim (hard-coded 384 in the module)
NEG_SLOPE = 0.2

# ---- packed-parameter slab layout: [SLAB_ROWS, 128] f32, section starts 8-aligned ----
W1EXT_COLS = 2 * HIDDEN + 2 * HEADS1        # 68: [W1 | W1@a_src(h0,h1) | W1@a_dst(h0,h1)]
W2ALL_COLS = 2 * OUT_DIM + 2                # 66: [W2 | W2@Wq1x | W2@a_src | W2@a_dst]
ROW_W1   = 0                                # rows  0:16, cols 0:68
ROW_BIAS = 16                               # row 16: b1 @ 0:64, b2 @ 64:96, qbias' @ 96:128
COL_B2   = 64
COL_QB   = 96
ROW_W2   = 24                               # rows 24:88, cols 0:66
ROW_WQ2  = 24                               # rows 24:56 (overlaps W2 rows, spare lanes)
COL_WQ2  = 120
SLAB_ROWS = 88
SLAB_COLS = 128


def _masked_softmax_rows(e, adj):
    """LeakyReLU(0.2) -> mask non-edges -> row softmax over sources.
    Relies on every row having >= 1 unmasked entry (guaranteed by self-loops)."""
    e = jnp.where(e > 0, e, NEG_SLOPE * e)
    e = jnp.where(adj, e, jnp.float32(-1e30))      # exp underflows to exactly 0
    m = jnp.max(e, axis=-1, keepdims=True)
    p = jnp.exp(e - m)
    # approx reciprocal (EUP slot): attention rows sum to 1 +- ~2^-14; the final
    # node softmax below uses an exact divide.
    return p * pl.reciprocal(jnp.sum(p, axis=-1, keepdims=True), approx=True)


def node_aligner_kernel(edge_ref, x_ref, p_ref, out_ref, *, num_edges):
    n = x_ref.shape[0]
    x = x_ref[...]                                                        # [N, 16]

    # ---- adjacency mask rebuilt in-kernel from the SMEM edge list (VPU-only,
    #      no XLA scatter; overlaps the first MXU matmul) ----
    rows = jax.lax.broadcasted_iota(jnp.int32, (n, n), 0)
    cols = jax.lax.broadcasted_iota(jnp.int32, (n, n), 1)
    adj = rows == cols                                   # add_self_loops=True
    for e in range(num_edges):                           # static unroll (tiny E)
        src = edge_ref[e]                                # SMEM scalar reads
        dst = edge_ref[num_edges + e]
        adj = jnp.logical_or(adj, (rows == dst) & (cols == src))

    # ---------------- GAT layer 1 (heads=2, concat): one fused lin+score matmul ----------------
    big1 = jnp.dot(x, p_ref[ROW_W1:ROW_W1 + IN_DIM, :],                  # [N, 128]
                   preferred_element_type=jnp.float32)
    hw1 = big1[:, 0:2 * HIDDEN]                                          # [N, 64]
    src_rows = jnp.transpose(big1[:, 2 * HIDDEN:2 * HIDDEN + HEADS1])    # [2, N] (one XLU op)
    bias_row = p_ref[ROW_BIAS:ROW_BIAS + 1, :]                           # [1, 128]
    heads = []
    for h in range(HEADS1):                                              # static unroll
        dcol = big1[:, 2 * HIDDEN + HEADS1 + h:2 * HIDDEN + HEADS1 + h + 1]
        alpha = _masked_softmax_rows(dcol + src_rows[h:h + 1, :], adj)   # [N, N]
        heads.append(jnp.dot(alpha, hw1[:, h * HIDDEN:(h + 1) * HIDDEN],
                             preferred_element_type=jnp.float32))        # [N, 32]
    h1 = jnp.concatenate(heads, axis=1) + bias_row[:, 0:2 * HIDDEN]      # [N, 64]

    # ---------------- GAT layer 2 (heads=1) + reassociated query projection ----------------
    w2rows = p_ref[ROW_W2:ROW_W2 + 2 * HIDDEN, :]                        # [64, 128]
    big2 = jnp.dot(h1, w2rows, preferred_element_type=jnp.float32)       # [N, 128]
    e2 = (big2[:, 2 * OUT_DIM + 1:2 * OUT_DIM + 2]                       # dst column
          + jnp.transpose(big2[:, 2 * OUT_DIM:2 * OUT_DIM + 1]))         # + src row
    alpha2 = _masked_softmax_rows(e2, adj)
    agg2 = jnp.dot(alpha2, big2[:, 0:2 * OUT_DIM],                       # [N, 64]:
                   preferred_element_type=jnp.float32)                   #  [h2-part | query-proj part]
    h2 = agg2[:, 0:OUT_DIM] + bias_row[:, COL_B2:COL_B2 + OUT_DIM]       # [N, 32]
    z = jnp.maximum(agg2[:, OUT_DIM:2 * OUT_DIM]
                    + bias_row[:, COL_QB:COL_QB + OUT_DIM], 0.0)         # relu(h2@Wq1x + q@Wq1q + bq1)

    # ---------------- node scores + exact softmax over nodes ----------------
    wq2 = w2rows[0:OUT_DIM, COL_WQ2:COL_WQ2 + 1]                         # [32, 1]
    s = jnp.transpose(jnp.dot(z, wq2, preferred_element_type=jnp.float32))  # [1, N] lane-dense
    s = s - jnp.max(s, axis=-1, keepdims=True)
    ps = jnp.exp(s)
    probs = ps / jnp.sum(ps, axis=-1, keepdims=True)                     # exact normalize

    # ---------------- single fused output store: [h2 | probs broadcast] ----------------
    out_ref[...] = jnp.concatenate([h2, jnp.broadcast_to(probs, (n, n))], axis=1)


def pack_params(params, query_emb):
    """Pack all weights into one [SLAB_ROWS, 128] f32 slab (single DMA).

    NOTE: the query projection (query_emb @ Wq1_q + bq1) and b2 @ Wq1x are folded
    into a single bias row, so a cached slab is ONLY valid for this exact
    query_emb.  bq2 is intentionally dropped (node softmax is shift-invariant)."""
    f32 = jnp.float32
    w1 = params['w1'].astype(f32)                                        # [16, 64]
    a1 = jnp.zeros((2 * HIDDEN, 2 * HEADS1), f32)
    a1 = a1.at[0:HIDDEN, 0].set(params['att_src1'][0])
    a1 = a1.at[HIDDEN:2 * HIDDEN, 1].set(params['att_src1'][1])
    a1 = a1.at[0:HIDDEN, 2].set(params['att_dst1'][0])
    a1 = a1.at[HIDDEN:2 * HIDDEN, 3].set(params['att_dst1'][1])
    w1ext = jnp.concatenate([w1, w1 @ a1], axis=1)                       # [16, 68]

    w2 = params['w2'].astype(f32)                                        # [64, 32]
    a2 = jnp.stack([params['att_src2'][0], params['att_dst2'][0]], axis=1)   # [32, 2]
    w2all = jnp.concatenate([w2, w2 @ params['wq1_x'], w2 @ a2], axis=1)     # [64, 66]

    qbias = (params['b2'] @ params['wq1_x']
             + query_emb.reshape(1, QDIM).astype(f32) @ params['wq1_q']
             + params['bq1'])                                            # [1, 32]

    slab = jnp.zeros((SLAB_ROWS, SLAB_COLS), f32)
    slab = slab.at[ROW_W1:ROW_W1 + IN_DIM, 0:W1EXT_COLS].set(w1ext)
    slab = slab.at[ROW_BIAS, 0:2 * HIDDEN].set(params['b1'][0])
    slab = slab.at[ROW_BIAS, COL_B2:COL_B2 + OUT_DIM].set(params['b2'][0])
    slab = slab.at[ROW_BIAS, COL_QB:COL_QB + OUT_DIM].set(qbias[0])
    slab = slab.at[ROW_W2:ROW_W2 + 2 * HIDDEN, 0:W2ALL_COLS].set(w2all)
    slab = slab.at[ROW_WQ2:ROW_WQ2 + OUT_DIM, COL_WQ2].set(params['wq2'][:, 0])
    return slab


def node_aligner_forward(x, edge_index, batch, query_emb, params, slab=None):
    """Single-graph forward.  If `slab` is supplied it MUST have been packed with
    the same params AND the same query_emb (the query projection is folded in)."""
    del batch  # present in the PyTorch signature but unused by the forward pass
    if slab is None:
        slab = pack_params(params, query_emb)
    n, num_edges = x.shape[0], edge_index.shape[1]

    # TODO(synk): for many graphs, stack B graphs along M (and/or a leading grid
    # axis with dimension_semantics=("parallel",) for v7x's two TensorCores) so
    # the MXU sees 128+ rows, and keep the slab's index_map constant so it is not
    # re-DMAed per grid step.  For large graphs, the dense NxN mask / unrolled
    # edge loop must be replaced by tiled masking.
    kernel = partial(node_aligner_kernel, num_edges=num_edges)
    smem = pl.BlockSpec(memory_space=pltpu.MemorySpace.SMEM)
    vmem = pl.BlockSpec(memory_space=pltpu.MemorySpace.VMEM)
    fused = pl.pallas_call(
        kernel,
        out_shape=jax.ShapeDtypeStruct((n, OUT_DIM + n), jnp.float32),
        in_specs=[smem, vmem, vmem],
        out_specs=vmem,
    )(edge_index.astype(jnp.int32).reshape(-1),   # [2*E] (src..., dst...) -> SMEM
      x.astype(jnp.float32), slab)
    return fused[:, 0:OUT_DIM], fused[0, OUT_DIM:OUT_DIM + n]


def init_params(key):
    ks = jax.random.split(key, 13)
    rnd = lambda k, s: (0.1 * jax.random.normal(k, s)).astype(jnp.float32)
    return dict(
        w1=rnd(ks[0], (IN_DIM, 2 * HIDDEN)),        # gnn1.lin.weight^T
        att_src1=rnd(ks[1], (2, HIDDEN)),
        att_dst1=rnd(ks[2], (2, HIDDEN)),
        b1=rnd(ks[3], (1, 2 * HIDDEN)),
        w2=rnd(ks[4], (2 * HIDDEN, OUT_DIM)),       # gnn2.lin.weight^T
        att_src2=rnd(ks[5], (1, OUT_DIM)),
        att_dst2=rnd(ks[6], (1, OUT_DIM)),
        b2=rnd(ks[7], (1, OUT_DIM)),
        wq1_x=rnd(ks[8], (OUT_DIM, OUT_DIM)),       # first OUT_DIM rows of Linear(out+384, out)
        wq1_q=rnd(ks[9], (QDIM, OUT_DIM)),          # last 384 rows
        bq1=rnd(ks[10], (1, OUT_DIM)),
        wq2=rnd(ks[11], (OUT_DIM, 1)),
        bq2=rnd(ks[12], (1, 1)),
    )


def reference_forward(x, edge_index, query_emb, params):
    """Pure-JAX reference with identical dense-GAT semantics."""
    n = x.shape[0]
    adj = jnp.zeros((n, n)).at[edge_index[1], edge_index[0]].set(1.0)
    adj = adj.at[jnp.arange(n), jnp.arange(n)].set(1.0)

    def gat(h, w, asrc, adst, b, heads, ch):
        hw = h @ w
        outs = []
        for hd in range(heads):
            xh = hw[:, hd * ch:(hd + 1) * ch]
            ss = (xh * asrc[hd]).sum(1)
            sd = (xh * adst[hd]).sum(1)
            e = sd[:, None] + ss[None, :]
            e = jnp.where(e > 0, e, NEG_SLOPE * e)
            e = jnp.where(adj > 0, e, -jnp.inf)
            outs.append(jax.nn.softmax(e, axis=1) @ xh)
        return jnp.concatenate(outs, axis=1) + b

    h1 = gat(x, params['w1'], params['att_src1'], params['att_dst1'], params['b1'], 2, HIDDEN)
    h2 = gat(h1, params['w2'], params['att_src2'], params['att_dst2'], params['b2'], 1, OUT_DIM)
    z = jax.nn.relu(h2 @ params['wq1_x'] + query_emb @ params['wq1_q'] + params['bq1'])
    s = (z @ params['wq2'] + params['bq2'])[:, 0]
    return h2, jax.nn.softmax(s, axis=0)


if __name__ == "__main__":
    key = jax.random.PRNGKey(0)
    k_x, k_q, k_p = jax.random.split(key, 3)

    x = jax.random.normal(k_x, (N, IN_DIM), jnp.float32)
    query_emb = jax.random.normal(k_q, (QDIM,), jnp.float32)
    # deterministic small graph: bidirectional ring + a few chords
    src = list(range(N)) + [(i + 1) % N for i in range(N)] + [0, 2, 3, 5]
    dst = [(i + 1) % N for i in range(N)] + list(range(N)) + [4, 6, 1, 7]
    edge_index = jnp.array([src, dst], jnp.int32)       # [2, E]
    batch = jnp.zeros((N,), jnp.int32)                  # unused (single graph)

    params = init_params(k_p)
    slab = pack_params(params, query_emb)               # one-time packing (bound to this query)

    x_out, probs = node_aligner_forward(x, edge_index, batch, query_emb, params, slab=slab)
    jax.block_until_ready((x_out, probs))

    x_ref, probs_ref = reference_forward(x, edge_index, query_emb, params)
    np.testing.assert_allclose(np.asarray(x_out), np.asarray(x_ref), rtol=5e-3, atol=1e-3)
    np.testing.assert_allclose(np.asarray(probs), np.asarray(probs_ref), rtol=5e-3, atol=5e-4)
    assert probs.shape == (N,) and x_out.shape == (N, OUT_DIM)
    assert abs(float(probs.sum()) - 1.0) < 1e-4

    print("KERNEL_OK")
</pallas_src>

<mosaic_0001>
module attributes {stable_mosaic.version = 11 : i64} {
  func.func @node_aligner_kernel(%arg0: memref<40xi32, #tpu.memory_space<smem>>, %arg1: memref<8x16xf32, #tpu.memory_space<vmem>>, %arg2: memref<88x128xf32, #tpu.memory_space<vmem>>, %arg3: memref<8x40xf32, #tpu.memory_space<vmem>>) attributes {dimension_semantics = [], scalar_prefetch = 0 : i64, scratch_operands = 0 : i64, tpu.core_type = #tpu.core_type<tc>} {
    %c0 = arith.constant 0 : index
    %c0_0 = arith.constant 0 : index
    %0 = vector.load %arg1[%c0, %c0_0] : memref<8x16xf32, #tpu.memory_space<vmem>>, vector<8x16xf32>
    %1 = tpu.iota {dimensions = array<i32: 0>} : vector<8x8xi32>
    %2 = tpu.iota {dimensions = array<i32: 1>} : vector<8x8xi32>
    %3 = arith.cmpi eq, %1, %2 : vector<8x8xi32>
    %c0_1 = arith.constant 0 : index
    %4 = memref.load %arg0[%c0_1] : memref<40xi32, #tpu.memory_space<smem>>
    %c20 = arith.constant 20 : index
    %5 = memref.load %arg0[%c20] : memref<40xi32, #tpu.memory_space<smem>>
    %6 = vector.broadcast %5 : i32 to vector<8x8xi32>
    %7 = arith.cmpi eq, %1, %6 : vector<8x8xi32>
    %8 = vector.broadcast %4 : i32 to vector<8x8xi32>
    %9 = arith.cmpi eq, %2, %8 : vector<8x8xi32>
    %10 = arith.andi %7, %9 : vector<8x8xi1>
    %11 = arith.ori %3, %10 : vector<8x8xi1>
    %c1 = arith.constant 1 : index
    %12 = memref.load %arg0[%c1] : memref<40xi32, #tpu.memory_space<smem>>
    %c21 = arith.constant 21 : index
    %13 = memref.load %arg0[%c21] : memref<40xi32, #tpu.memory_space<smem>>
    %14 = vector.broadcast %13 : i32 to vector<8x8xi32>
    %15 = arith.cmpi eq, %1, %14 : vector<8x8xi32>
    %16 = vector.broadcast %12 : i32 to vector<8x8xi32>
    %17 = arith.cmpi eq, %2, %16 : vector<8x8xi32>
    %18 = arith.andi %15, %17 : vector<8x8xi1>
    %19 = arith.ori %11, %18 : vector<8x8xi1>
    %c2 = arith.constant 2 : index
    %20 = memref.load %arg0[%c2] : memref<40xi32, #tpu.memory_space<smem>>
    %c22 = arith.constant 22 : index
    %21 = memref.load %arg0[%c22] : memref<40xi32, #tpu.memory_space<smem>>
    %22 = vector.broadcast %21 : i32 to vector<8x8xi32>
    %23 = arith.cmpi eq, %1, %22 : vector<8x8xi32>
    %24 = vector.broadcast %20 : i32 to vector<8x8xi32>
    %25 = arith.cmpi eq, %2, %24 : vector<8x8xi32>
    %26 = arith.andi %23, %25 : vector<8x8xi1>
    %27 = arith.ori %19, %26 : vector<8x8xi1>
    %c3 = arith.constant 3 : index
    %28 = memref.load %arg0[%c3] : memref<40xi32, #tpu.memory_space<smem>>
    %c23 = arith.constant 23 : index
    %29 = memref.load %arg0[%c23] : memref<40xi32, #tpu.memory_space<smem>>
    %30 = vector.broadcast %29 : i32 to vector<8x8xi32>
    %31 = arith.cmpi eq, %1, %30 : vector<8x8xi32>
    %32 = vector.broadcast %28 : i32 to vector<8x8xi32>
    %33 = arith.cmpi eq, %2, %32 : vector<8x8xi32>
    %34 = arith.andi %31, %33 : vector<8x8xi1>
    %35 = arith.ori %27, %34 : vector<8x8xi1>
    %c4 = arith.constant 4 : index
    %36 = memref.load %arg0[%c4] : memref<40xi32, #tpu.memory_space<smem>>
    %c24 = arith.constant 24 : index
    %37 = memref.load %arg0[%c24] : memref<40xi32, #tpu.memory_space<smem>>
    %38 = vector.broadcast %37 : i32 to vector<8x8xi32>
    %39 = arith.cmpi eq, %1, %38 : vector<8x8xi32>
    %40 = vector.broadcast %36 : i32 to vector<8x8xi32>
    %41 = arith.cmpi eq, %2, %40 : vector<8x8xi32>
    %42 = arith.andi %39, %41 : vector<8x8xi1>
    %43 = arith.ori %35, %42 : vector<8x8xi1>
    %c5 = arith.constant 5 : index
    %44 = memref.load %arg0[%c5] : memref<40xi32, #tpu.memory_space<smem>>
    %c25 = arith.constant 25 : index
    %45 = memref.load %arg0[%c25] : memref<40xi32, #tpu.memory_space<smem>>
    %46 = vector.broadcast %45 : i32 to vector<8x8xi32>
    %47 = arith.cmpi eq, %1, %46 : vector<8x8xi32>
    %48 = vector.broadcast %44 : i32 to vector<8x8xi32>
    %49 = arith.cmpi eq, %2, %48 : vector<8x8xi32>
    %50 = arith.andi %47, %49 : vector<8x8xi1>
    %51 = arith.ori %43, %50 : vector<8x8xi1>
    %c6 = arith.constant 6 : index
    %52 = memref.load %arg0[%c6] : memref<40xi32, #tpu.memory_space<smem>>
    %c26 = arith.constant 26 : index
    %53 = memref.load %arg0[%c26] : memref<40xi32, #tpu.memory_space<smem>>
    %54 = vector.broadcast %53 : i32 to vector<8x8xi32>
    %55 = arith.cmpi eq, %1, %54 : vector<8x8xi32>
    %56 = vector.broadcast %52 : i32 to vector<8x8xi32>
    %57 = arith.cmpi eq, %2, %56 : vector<8x8xi32>
    %58 = arith.andi %55, %57 : vector<8x8xi1>
    %59 = arith.ori %51, %58 : vector<8x8xi1>
    %c7 = arith.constant 7 : index
    %60 = memref.load %arg0[%c7] : memref<40xi32, #tpu.memory_space<smem>>
    %c27 = arith.constant 27 : index
    %61 = memref.load %arg0[%c27] : memref<40xi32, #tpu.memory_space<smem>>
    %62 = vector.broadcast %61 : i32 to vector<8x8xi32>
    %63 = arith.cmpi eq, %1, %62 : vector<8x8xi32>
    %64 = vector.broadcast %60 : i32 to vector<8x8xi32>
    %65 = arith.cmpi eq, %2, %64 : vector<8x8xi32>
    %66 = arith.andi %63, %65 : vector<8x8xi1>
    %67 = arith.ori %59, %66 : vector<8x8xi1>
    %c8 = arith.constant 8 : index
    %68 = memref.load %arg0[%c8] : memref<40xi32, #tpu.memory_space<smem>>
    %c28 = arith.constant 28 : index
    %69 = memref.load %arg0[%c28] : memref<40xi32, #tpu.memory_space<smem>>
    %70 = vector.broadcast %69 : i32 to vector<8x8xi32>
    %71 = arith.cmpi eq, %1, %70 : vector<8x8xi32>
    %72 = vector.broadcast %68 : i32 to vector<8x8xi32>
    %73 = arith.cmpi eq, %2, %72 : vector<8x8xi32>
    %74 = arith.andi %71, %73 : vector<8x8xi1>
    %75 = arith.ori %67, %74 : vector<8x8xi1>
    %c9 = arith.constant 9 : index
    %76 = memref.load %arg0[%c9] : memref<40xi32, #tpu.memory_space<smem>>
    %c29 = arith.constant 29 : index
    %77 = memref.load %arg0[%c29] : memref<40xi32, #tpu.memory_space<smem>>
    %78 = vector.broadcast %77 : i32 to vector<8x8xi32>
    %79 = arith.cmpi eq, %1, %78 : vector<8x8xi32>
    %80 = vector.broadcast %76 : i32 to vector<8x8xi32>
    %81 = arith.cmpi eq, %2, %80 : vector<8x8xi32>
    %82 = arith.andi %79, %81 : vector<8x8xi1>
    %83 = arith.ori %75, %82 : vector<8x8xi1>
    %c10 = arith.constant 10 : index
    %84 = memref.load %arg0[%c10] : memref<40xi32, #tpu.memory_space<smem>>
    %c30 = arith.constant 30 : index
    %85 = memref.load %arg0[%c30] : memref<40xi32, #tpu.memory_space<smem>>
    %86 = vector.broadcast %85 : i32 to vector<8x8xi32>
    %87 = arith.cmpi eq, %1, %86 : vector<8x8xi32>
    %88 = vector.broadcast %84 : i32 to vector<8x8xi32>
    %89 = arith.cmpi eq, %2, %88 : vector<8x8xi32>
    %90 = arith.andi %87, %89 : vector<8x8xi1>
    %91 = arith.ori %83, %90 : vector<8x8xi1>
    %c11 = arith.constant 11 : index
    %92 = memref.load %arg0[%c11] : memref<40xi32, #tpu.memory_space<smem>>
    %c31 = arith.constant 31 : index
    %93 = memref.load %arg0[%c31] : memref<40xi32, #tpu.memory_space<smem>>
    %94 = vector.broadcast %93 : i32 to vector<8x8xi32>
    %95 = arith.cmpi eq, %1, %94 : vector<8x8xi32>
    %96 = vector.broadcast %92 : i32 to vector<8x8xi32>
    %97 = arith.cmpi eq, %2, %96 : vector<8x8xi32>
    %98 = arith.andi %95, %97 : vector<8x8xi1>
    %99 = arith.ori %91, %98 : vector<8x8xi1>
    %c12 = arith.constant 12 : index
    %100 = memref.load %arg0[%c12] : memref<40xi32, #tpu.memory_space<smem>>
    %c32 = arith.constant 32 : index
    %101 = memref.load %arg0[%c32] : memref<40xi32, #tpu.memory_space<smem>>
    %102 = vector.broadcast %101 : i32 to vector<8x8xi32>
    %103 = arith.cmpi eq, %1, %102 : vector<8x8xi32>
    %104 = vector.broadcast %100 : i32 to vector<8x8xi32>
    %105 = arith.cmpi eq, %2, %104 : vector<8x8xi32>
    %106 = arith.andi %103, %105 : vector<8x8xi1>
    %107 = arith.ori %99, %106 : vector<8x8xi1>
    %c13 = arith.constant 13 : index
    %108 = memref.load %arg0[%c13] : memref<40xi32, #tpu.memory_space<smem>>
    %c33 = arith.constant 33 : index
    %109 = memref.load %arg0[%c33] : memref<40xi32, #tpu.memory_space<smem>>
    %110 = vector.broadcast %109 : i32 to vector<8x8xi32>
    %111 = arith.cmpi eq, %1, %110 : vector<8x8xi32>
    %112 = vector.broadcast %108 : i32 to vector<8x8xi32>
    %113 = arith.cmpi eq, %2, %112 : vector<8x8xi32>
    %114 = arith.andi %111, %113 : vector<8x8xi1>
    %115 = arith.ori %107, %114 : vector<8x8xi1>
    %c14 = arith.constant 14 : index
    %116 = memref.load %arg0[%c14] : memref<40xi32, #tpu.memory_space<smem>>
    %c34 = arith.constant 34 : index
    %117 = memref.load %arg0[%c34] : memref<40xi32, #tpu.memory_space<smem>>
    %118 = vector.broadcast %117 : i32 to vector<8x8xi32>
    %119 = arith.cmpi eq, %1, %118 : vector<8x8xi32>
    %120 = vector.broadcast %116 : i32 to vector<8x8xi32>
    %121 = arith.cmpi eq, %2, %120 : vector<8x8xi32>
    %122 = arith.andi %119, %121 : vector<8x8xi1>
    %123 = arith.ori %115, %122 : vector<8x8xi1>
    %c15 = arith.constant 15 : index
    %124 = memref.load %arg0[%c15] : memref<40xi32, #tpu.memory_space<smem>>
    %c35 = arith.constant 35 : index
    %125 = memref.load %arg0[%c35] : memref<40xi32, #tpu.memory_space<smem>>
    %126 = vector.broadcast %125 : i32 to vector<8x8xi32>
    %127 = arith.cmpi eq, %1, %126 : vector<8x8xi32>
    %128 = vector.broadcast %124 : i32 to vector<8x8xi32>
    %129 = arith.cmpi eq, %2, %128 : vector<8x8xi32>
    %130 = arith.andi %127, %129 : vector<8x8xi1>
    %131 = arith.ori %123, %130 : vector<8x8xi1>
    %c16 = arith.constant 16 : index
    %132 = memref.load %arg0[%c16] : memref<40xi32, #tpu.memory_space<smem>>
    %c36 = arith.constant 36 : index
    %133 = memref.load %arg0[%c36] : memref<40xi32, #tpu.memory_space<smem>>
    %134 = vector.broadcast %133 : i32 to vector<8x8xi32>
    %135 = arith.cmpi eq, %1, %134 : vector<8x8xi32>
    %136 = vector.broadcast %132 : i32 to vector<8x8xi32>
    %137 = arith.cmpi eq, %2, %136 : vector<8x8xi32>
    %138 = arith.andi %135, %137 : vector<8x8xi1>
    %139 = arith.ori %131, %138 : vector<8x8xi1>
    %c17 = arith.constant 17 : index
    %140 = memref.load %arg0[%c17] : memref<40xi32, #tpu.memory_space<smem>>
    %c37 = arith.constant 37 : index
    %141 = memref.load %arg0[%c37] : memref<40xi32, #tpu.memory_space<smem>>
    %142 = vector.broadcast %141 : i32 to vector<8x8xi32>
    %143 = arith.cmpi eq, %1, %142 : vector<8x8xi32>
    %144 = vector.broadcast %140 : i32 to vector<8x8xi32>
    %145 = arith.cmpi eq, %2, %144 : vector<8x8xi32>
    %146 = arith.andi %143, %145 : vector<8x8xi1>
    %147 = arith.ori %139, %146 : vector<8x8xi1>
    %c18 = arith.constant 18 : index
    %148 = memref.load %arg0[%c18] : memref<40xi32, #tpu.memory_space<smem>>
    %c38 = arith.constant 38 : index
    %149 = memref.load %arg0[%c38] : memref<40xi32, #tpu.memory_space<smem>>
    %150 = vector.broadcast %149 : i32 to vector<8x8xi32>
    %151 = arith.cmpi eq, %1, %150 : vector<8x8xi32>
    %152 = vector.broadcast %148 : i32 to vector<8x8xi32>
    %153 = arith.cmpi eq, %2, %152 : vector<8x8xi32>
    %154 = arith.andi %151, %153 : vector<8x8xi1>
    %155 = arith.ori %147, %154 : vector<8x8xi1>
    %c19 = arith.constant 19 : index
    %156 = memref.load %arg0[%c19] : memref<40xi32, #tpu.memory_space<smem>>
    %c39 = arith.constant 39 : index
    %157 = memref.load %arg0[%c39] : memref<40xi32, #tpu.memory_space<smem>>
    %158 = vector.broadcast %157 : i32 to vector<8x8xi32>
    %159 = arith.cmpi eq, %1, %158 : vector<8x8xi32>
    %160 = vector.broadcast %156 : i32 to vector<8x8xi32>
    %161 = arith.cmpi eq, %2, %160 : vector<8x8xi32>
    %162 = arith.andi %159, %161 : vector<8x8xi1>
    %163 = arith.ori %155, %162 : vector<8x8xi1>
    %c0_2 = arith.constant 0 : index
    %c0_3 = arith.constant 0 : index
    %164 = vector.load %arg2[%c0_2, %c0_3] : memref<88x128xf32, #tpu.memory_space<vmem>>, vector<16x128xf32>
    %cst = arith.constant dense<0.000000e+00> : vector<8x128xf32>
    %165 = tpu.matmul %0, %164, %cst {dimension_numbers = #tpu.dot_dimension_numbers<[1], [0], [0], [1], [0, 0, 1, 1], [], []>} : vector<8x16xf32>, vector<16x128xf32>, vector<8x128xf32> -> vector<8x128xf32>
    %166 = vector.extract_strided_slice %165 {offsets = [0, 0], sizes = [8, 64], strides = [1, 1]} : vector<8x128xf32> to vector<8x64xf32>
    %167 = vector.extract_strided_slice %165 {offsets = [0, 64], sizes = [8, 2], strides = [1, 1]} : vector<8x128xf32> to vector<8x2xf32>
    %168 = tpu.transpose %167, [1, 0] : vector<8x2xf32> -> vector<2x8xf32>
    %c16_4 = arith.constant 16 : index
    %c0_5 = arith.constant 0 : index
    %169 = vector.load %arg2[%c16_4, %c0_5] : memref<88x128xf32, #tpu.memory_space<vmem>>, vector<1x128xf32>
    %170 = vector.extract_strided_slice %165 {offsets = [0, 66], sizes = [8, 1], strides = [1, 1]} : vector<8x128xf32> to vector<8x1xf32>
    %171 = vector.extract_strided_slice %168 {offsets = [0, 0], sizes = [1, 8], strides = [1, 1]} : vector<2x8xf32> to vector<1x8xf32>
    %172 = vector.broadcast %170 : vector<8x1xf32> to vector<8x8xf32>
    %173 = vector.broadcast %171 : vector<1x8xf32> to vector<8x8xf32>
    %174 = arith.addf %172, %173 : vector<8x8xf32>
    %cst_6 = arith.constant 0.000000e+00 : f32
    %175 = vector.broadcast %cst_6 : f32 to vector<8x8xf32>
    %176 = arith.cmpf ogt, %174, %175 : vector<8x8xf32>
    %cst_7 = arith.constant 2.000000e-01 : f32
    %177 = vector.broadcast %cst_7 : f32 to vector<8x8xf32>
    %178 = arith.mulf %177, %174 : vector<8x8xf32>
    %179 = arith.select %176, %174, %178 : vector<8x8xi1>, vector<8x8xf32>
    %cst_8 = arith.constant -1.000000e+30 : f32
    %180 = vector.broadcast %cst_8 : f32 to vector<8x8xf32>
    %181 = arith.select %163, %179, %180 : vector<8x8xi1>, vector<8x8xf32>
    %cst_9 = arith.constant dense<0xFF800000> : vector<8xf32>
    %182 = vector.multi_reduction <maximumf>, %181, %cst_9 [1] : vector<8x8xf32> to vector<8xf32>
    %183 = vector.shape_cast %182 : vector<8xf32> to vector<8x1xf32>
    %184 = vector.broadcast %183 : vector<8x1xf32> to vector<8x8xf32>
    %185 = arith.subf %181, %184 : vector<8x8xf32>
    %186 = math.exp %185 : vector<8x8xf32>
    %cst_10 = arith.constant dense<0.000000e+00> : vector<8xf32>
    %187 = vector.multi_reduction <add>, %186, %cst_10 [1] : vector<8x8xf32> to vector<8xf32>
    %188 = vector.shape_cast %187 : vector<8xf32> to vector<8x1xf32>
    %189 = tpu.reciprocal %188 {approx = true} : vector<8x1xf32> -> vector<8x1xf32>
    %190 = vector.broadcast %189 : vector<8x1xf32> to vector<8x8xf32>
    %191 = arith.mulf %186, %190 : vector<8x8xf32>
    %192 = vector.extract_strided_slice %166 {offsets = [0, 0], sizes = [8, 32], strides = [1, 1]} : vector<8x64xf32> to vector<8x32xf32>
    %cst_11 = arith.constant dense<0.000000e+00> : vector<8x32xf32>
    %193 = tpu.matmul %191, %192, %cst_11 {dimension_numbers = #tpu.dot_dimension_numbers<[1], [0], [0], [1], [0, 0, 1, 1], [], []>} : vector<8x8xf32>, vector<8x32xf32>, vector<8x32xf32> -> vector<8x32xf32>
    %194 = vector.extract_strided_slice %165 {offsets = [0, 67], sizes = [8, 1], strides = [1, 1]} : vector<8x128xf32> to vector<8x1xf32>
    %195 = vector.extract_strided_slice %168 {offsets = [1, 0], sizes = [1, 8], strides = [1, 1]} : vector<2x8xf32> to vector<1x8xf32>
    %196 = vector.broadcast %194 : vector<8x1xf32> to vector<8x8xf32>
    %197 = vector.broadcast %195 : vector<1x8xf32> to vector<8x8xf32>
    %198 = arith.addf %196, %197 : vector<8x8xf32>
    %cst_12 = arith.constant 0.000000e+00 : f32
    %199 = vector.broadcast %cst_12 : f32 to vector<8x8xf32>
    %200 = arith.cmpf ogt, %198, %199 : vector<8x8xf32>
    %cst_13 = arith.constant 2.000000e-01 : f32
    %201 = vector.broadcast %cst_13 : f32 to vector<8x8xf32>
    %202 = arith.mulf %201, %198 : vector<8x8xf32>
    %203 = arith.select %200, %198, %202 : vector<8x8xi1>, vector<8x8xf32>
    %cst_14 = arith.constant -1.000000e+30 : f32
    %204 = vector.broadcast %cst_14 : f32 to vector<8x8xf32>
    %205 = arith.select %163, %203, %204 : vector<8x8xi1>, vector<8x8xf32>
    %cst_15 = arith.constant dense<0xFF800000> : vector<8xf32>
    %206 = vector.multi_reduction <maximumf>, %205, %cst_15 [1] : vector<8x8xf32> to vector<8xf32>
    %207 = vector.shape_cast %206 : vector<8xf32> to vector<8x1xf32>
    %208 = vector.broadcast %207 : vector<8x1xf32> to vector<8x8xf32>
    %209 = arith.subf %205, %208 : vector<8x8xf32>
    %210 = math.exp %209 : vector<8x8xf32>
    %cst_16 = arith.constant dense<0.000000e+00> : vector<8xf32>
    %211 = vector.multi_reduction <add>, %210, %cst_16 [1] : vector<8x8xf32> to vector<8xf32>
    %212 = vector.shape_cast %211 : vector<8xf32> to vector<8x1xf32>
    %213 = tpu.reciprocal %212 {approx = true} : vector<8x1xf32> -> vector<8x1xf32>
    %214 = vector.broadcast %213 : vector<8x1xf32> to vector<8x8xf32>
    %215 = arith.mulf %210, %214 : vector<8x8xf32>
    %216 = vector.extract_strided_slice %166 {offsets = [0, 32], sizes = [8, 32], strides = [1, 1]} : vector<8x64xf32> to vector<8x32xf32>
    %cst_17 = arith.constant dense<0.000000e+00> : vector<8x32xf32>
    %217 = tpu.matmul %215, %216, %cst_17 {dimension_numbers = #tpu.dot_dimension_numbers<[1], [0], [0], [1], [0, 0, 1, 1], [], []>} : vector<8x8xf32>, vector<8x32xf32>, vector<8x32xf32> -> vector<8x32xf32>
    %218 = tpu.concatenate %193, %217 in 1 : vector<8x32xf32>, vector<8x32xf32> -> vector<8x64xf32>
    %219 = vector.extract_strided_slice %169 {offsets = [0, 0], sizes = [1, 64], strides = [1, 1]} : vector<1x128xf32> to vector<1x64xf32>
    %220 = vector.broadcast %219 : vector<1x64xf32> to vector<8x64xf32>
    %221 = arith.addf %218, %220 : vector<8x64xf32>
    %c24_18 = arith.constant 24 : index
    %c0_19 = arith.constant 0 : index
    %222 = vector.load %arg2[%c24_18, %c0_19] : memref<88x128xf32, #tpu.memory_space<vmem>>, vector<64x128xf32>
    %cst_20 = arith.constant dense<0.000000e+00> : vector<8x128xf32>
    %223 = tpu.matmul %221, %222, %cst_20 {dimension_numbers = #tpu.dot_dimension_numbers<[1], [0], [0], [1], [0, 0, 1, 1], [], []>} : vector<8x64xf32>, vector<64x128xf32>, vector<8x128xf32> -> vector<8x128xf32>
    %224 = vector.extract_strided_slice %223 {offsets = [0, 65], sizes = [8, 1], strides = [1, 1]} : vector<8x128xf32> to vector<8x1xf32>
    %225 = vector.extract_strided_slice %223 {offsets = [0, 64], sizes = [8, 1], strides = [1, 1]} : vector<8x128xf32> to vector<8x1xf32>
    %226 = tpu.transpose %225, [1, 0] : vector<8x1xf32> -> vector<1x8xf32>
    %227 = vector.broadcast %224 : vector<8x1xf32> to vector<8x8xf32>
    %228 = vector.broadcast %226 : vector<1x8xf32> to vector<8x8xf32>
    %229 = arith.addf %227, %228 : vector<8x8xf32>
    %cst_21 = arith.constant 0.000000e+00 : f32
    %230 = vector.broadcast %cst_21 : f32 to vector<8x8xf32>
    %231 = arith.cmpf ogt, %229, %230 : vector<8x8xf32>
    %cst_22 = arith.constant 2.000000e-01 : f32
    %232 = vector.broadcast %cst_22 : f32 to vector<8x8xf32>
    %233 = arith.mulf %232, %229 : vector<8x8xf32>
    %234 = arith.select %231, %229, %233 : vector<8x8xi1>, vector<8x8xf32>
    %cst_23 = arith.constant -1.000000e+30 : f32
    %235 = vector.broadcast %cst_23 : f32 to vector<8x8xf32>
    %236 = arith.select %163, %234, %235 : vector<8x8xi1>, vector<8x8xf32>
    %cst_24 = arith.constant dense<0xFF800000> : vector<8xf32>
    %237 = vector.multi_reduction <maximumf>, %236, %cst_24 [1] : vector<8x8xf32> to vector<8xf32>
    %238 = vector.shape_cast %237 : vector<8xf32> to vector<8x1xf32>
    %239 = vector.broadcast %238 : vector<8x1xf32> to vector<8x8xf32>
    %240 = arith.subf %236, %239 : vector<8x8xf32>
    %241 = math.exp %240 : vector<8x8xf32>
    %cst_25 = arith.constant dense<0.000000e+00> : vector<8xf32>
    %242 = vector.multi_reduction <add>, %241, %cst_25 [1] : vector<8x8xf32> to vector<8xf32>
    %243 = vector.shape_cast %242 : vector<8xf32> to vector<8x1xf32>
    %244 = tpu.reciprocal %243 {approx = true} : vector<8x1xf32> -> vector<8x1xf32>
    %245 = vector.broadcast %244 : vector<8x1xf32> to vector<8x8xf32>
    %246 = arith.mulf %241, %245 : vector<8x8xf32>
    %247 = vector.extract_strided_slice %223 {offsets = [0, 0], sizes = [8, 64], strides = [1, 1]} : vector<8x128xf32> to vector<8x64xf32>
    %cst_26 = arith.constant dense<0.000000e+00> : vector<8x64xf32>
    %248 = tpu.matmul %246, %247, %cst_26 {dimension_numbers = #tpu.dot_dimension_numbers<[1], [0], [0], [1], [0, 0, 1, 1], [], []>} : vector<8x8xf32>, vector<8x64xf32>, vector<8x64xf32> -> vector<8x64xf32>
    %249 = vector.extract_strided_slice %248 {offsets = [0, 0], sizes = [8, 32], strides = [1, 1]} : vector<8x64xf32> to vector<8x32xf32>
    %250 = vector.extract_strided_slice %169 {offsets = [0, 64], sizes = [1, 32], strides = [1, 1]} : vector<1x128xf32> to vector<1x32xf32>
    %251 = vector.broadcast %250 : vector<1x32xf32> to vector<8x32xf32>
    %252 = arith.addf %249, %251 : vector<8x32xf32>
    %253 = vector.extract_strided_slice %248 {offsets = [0, 32], sizes = [8, 32], strides = [1, 1]} : vector<8x64xf32> to vector<8x32xf32>
    %254 = vector.extract_strided_slice %169 {offsets = [0, 96], sizes = [1, 32], strides = [1, 1]} : vector<1x128xf32> to vector<1x32xf32>
    %255 = vector.broadcast %254 : vector<1x32xf32> to vector<8x32xf32>
    %256 = arith.addf %253, %255 : vector<8x32xf32>
    %cst_27 = arith.constant 0.000000e+00 : f32
    %257 = vector.broadcast %cst_27 : f32 to vector<8x32xf32>
    %258 = arith.maximumf %256, %257 : vector<8x32xf32>
    %259 = vector.extract_strided_slice %222 {offsets = [0, 120], sizes = [32, 1], strides = [1, 1]} : vector<64x128xf32> to vector<32x1xf32>
    %cst_28 = arith.constant dense<0.000000e+00> : vector<8x1xf32>
    %260 = tpu.matmul %258, %259, %cst_28 {dimension_numbers = #tpu.dot_dimension_numbers<[1], [0], [0], [1], [0, 0, 1, 1], [], []>} : vector<8x32xf32>, vector<32x1xf32>, vector<8x1xf32> -> vector<8x1xf32>
    %261 = tpu.transpose %260, [1, 0] : vector<8x1xf32> -> vector<1x8xf32>
    %cst_29 = arith.constant dense<0xFF800000> : vector<1xf32>
    %262 = vector.multi_reduction <maximumf>, %261, %cst_29 [1] : vector<1x8xf32> to vector<1xf32>
    %263 = vector.shape_cast %262 : vector<1xf32> to vector<1x1xf32>
    %264 = vector.broadcast %263 : vector<1x1xf32> to vector<1x8xf32>
    %265 = arith.subf %261, %264 : vector<1x8xf32>
    %266 = math.exp %265 : vector<1x8xf32>
    %cst_30 = arith.constant dense<0.000000e+00> : vector<1xf32>
    %267 = vector.multi_reduction <add>, %266, %cst_30 [1] : vector<1x8xf32> to vector<1xf32>
    %268 = vector.shape_cast %267 : vector<1xf32> to vector<1x1xf32>
    %269 = vector.broadcast %268 : vector<1x1xf32> to vector<1x8xf32>
    %270 = arith.divf %266, %269 : vector<1x8xf32>
    %271 = vector.shape_cast %270 : vector<1x8xf32> to vector<1x8xf32>
    %272 = vector.broadcast %271 : vector<1x8xf32> to vector<8x8xf32>
    %273 = tpu.concatenate %252, %272 in 1 : vector<8x32xf32>, vector<8x8xf32> -> vector<8x40xf32>
    %c0_31 = arith.constant 0 : index
    %c0_32 = arith.constant 0 : index
    %274 = vector.load %arg3[%c0_31, %c0_32] : memref<8x40xf32, #tpu.memory_space<vmem>>, vector<8x40xf32>
    tpu.vector_store %arg3[%c0_31, %c0_32], %273 {strides = array<i32>} : memref<8x40xf32, #tpu.memory_space<vmem>>, vector<8x40xf32>,
    return
  }
}

</mosaic_0001>

<llo_original>
// kernel: tpu_custom_call.1
$region0: #{tpu_custom_call.1}
  #allocation0 [shape = 'u32[]', space=smem, size = 0x4, offset = 0x4, fixed_abs, tag = 'smem constant byte address 0x4 - core index']
  #allocation1 [shape = 'u32[144,128]{1,0:T(1,128)}', space=vmem, size = 0x12000, scoped, tag = 'internal scratch']
  %s0 = inlined_call_operand.hbm [shape: s32[40], index: 0, kind: input, shape index: {}]
  %s1 = inlined_call_operand.hbm [shape: f32[8,16], index: 1, kind: input, shape index: {}]
  %s2 = inlined_call_operand.hbm [shape: f32[88,128], index: 2, kind: input, shape index: {}]
  %s3 = inlined_call_operand.hbm [shape: f32[8,40], index: 3, kind: output, shape index: {}]
  %s4 = sld [smem:[#allocation0]]
  $region34: #{tpu_custom_call.1} parent=0
    _
  %s6 = ssub.s32 1, %s4
  %s7 = scalar_select 0, %s6, %s4
  $region1: #{tpu_custom_call.1} parent=0
    #allocation2 [shape = 'u8[512]{0}', space=smem, size = 0x200, scoped, tag = 'input window, operand 0, single buffered']
    #allocation3 [shape = 's32[1]{0}', space=sflag, size = 0x4, scoped, tag = 'scoped memory for tpu_custom_call.1']
    #allocation4 [shape = 's32[1]{0}', space=sflag, size = 0x4, scoped, tag = 'scoped memory for tpu_custom_call.1']
    #allocation5 [shape = 's32[1]{0}', space=sflag, size = 0x4, scoped, tag = 'scoped memory for tpu_custom_call.1']
    #allocation6 [shape = 'u8[4096]{0}', space=vmem, size = 0x1000, scoped, tag = 'input window, operand 1, single buffered']
    #allocation7 [shape = 'u8[45056]{0}', space=vmem, size = 0xb000, scoped, tag = 'input window, operand 2, single buffered']
    #allocation8 [shape = 's32[1]{0}', space=sflag, size = 0x4, scoped, tag = 'scoped memory for tpu_custom_call.1']
    #allocation9 [shape = 'u8[4096]{0}', space=vmem, size = 0x1000, scoped, tag = 'output window, operand 0, single buffered']
    %8 = vsyncpa [#allocation5], 0
    %9 = vsyncpa [#allocation3], 0
    %10 = vsyncpa [#allocation8], 0
    %11 = vsyncpa [#allocation4], 0
    // Predicated region
    $region2: #{tpu_custom_call.1} parent=1 // pred_check
      _
    $region3: #{tpu_custom_call.1} parent=1 // pred_check_branch
      %13 = sbr.rel (0) target = $region5
    $region4: #{tpu_custom_call.1} parent=1 // pred_region
      %s15 = ssub.s32 16, 16
      %16 = vsyncadd [#allocation5], %s15
      %19 = dma.hbm_to_smem %s0, 16, [#allocation2], [#allocation5]
    $region5: #{tpu_custom_call.1} parent=1 // pred_fallthru
      _
    // Predicated region
    $region6: #{tpu_custom_call.1} parent=1 // pred_check
      _
    $region7: #{tpu_custom_call.1} parent=1 // pred_check_branch
      %21 = sbr.rel (0) target = $region9
    $region8: #{tpu_custom_call.1} parent=1 // pred_region
      %s23 = ssub.s32 128, 128
      %24 = vsyncadd [#allocation3], %s23
      %s26 = sshll.u32 [#allocation6], 4
      %s27 = int_to_ptr.vmem [resolvable:$true] %s26
      %29 = dma.hbm_to_vmem [thread:$0]  %s1, 128, %s27, [#allocation3]
    $region9: #{tpu_custom_call.1} parent=1 // pred_fallthru
      _
    // Predicated region
    $region10: #{tpu_custom_call.1} parent=1 // pred_check
      _
    $region11: #{tpu_custom_call.1} parent=1 // pred_check_branch
      %31 = sbr.rel (0) target = $region13
    $region12: #{tpu_custom_call.1} parent=1 // pred_region
      %s33 = ssub.s32 1408, 1408
      %34 = vsyncadd [#allocation8], %s33
      %s35 = sshll.u32 [#allocation7], 4
      %s36 = int_to_ptr.vmem [resolvable:$true] %s35
      %41 = dma.hbm_to_vmem [thread:$0]  %s2, 1408, %s36, [#allocation8], 128, 128, 8
    $region13: #{tpu_custom_call.1} parent=1 // pred_fallthru
      _
    // Predicated region
    $region14: #{tpu_custom_call.1} parent=1 // pred_check
      _
    $region15: #{tpu_custom_call.1} parent=1 // pred_check_branch
      %43 = sbr.rel (0) target = $region17
    $region16: #{tpu_custom_call.1} parent=1 // pred_region
      %44 = dma.done [#allocation5], 16
    $region17: #{tpu_custom_call.1} parent=1 // pred_fallthru
      _
    // Predicated region
    $region18: #{tpu_custom_call.1} parent=1 // pred_check
      _
    $region19: #{tpu_custom_call.1} parent=1 // pred_check_branch
      %46 = sbr.rel (0) target = $region21
    $region20: #{tpu_custom_call.1} parent=1 // pred_region
      %47 = dma.done [#allocation3], 128
    $region21: #{tpu_custom_call.1} parent=1 // pred_fallthru
      _
    // Predicated region
    $region22: #{tpu_custom_call.1} parent=1 // pred_check
      _
    $region23: #{tpu_custom_call.1} parent=1 // pred_check_branch
      %49 = sbr.rel (0) target = $region25
    $region24: #{tpu_custom_call.1} parent=1 // pred_region
      %50 = dma.done [#allocation8], 1408
    $region25: #{tpu_custom_call.1} parent=1 // pred_fallthru
      _
    %51 = sfence
    %v52 = vld [vmem:[#allocation6] sm:$0xff]
    %v53 = vlaneseq
    %v54 = vshrl.u32 %v53, 7
    %v55 = vlaneseq
    %v56 = vand.u32 %v55, 127
    %vm57 = vcmp.eq.s32.totalorder %v54, %v56
    %s58 = sld [smem:[#allocation2]]
    %s59 = sld [smem:[#allocation2 + $0x14]]
    %v60 = vstv %s59
    %vm61 = vcmp.eq.s32.totalorder %v54, %v60
    %v62 = vstv %s58
    %vm63 = vcmp.eq.s32.totalorder %v56, %v62
    %vm64 = vmand %vm61, %vm63
    %vm65 = vmor %vm57, %vm64
    %s66 = sld [smem:[#allocation2 + $0x1]]
    %s67 = sld [smem:[#allocation2 + $0x15]]
    %v68 = vstv %s67
    %vm69 = vcmp.eq.s32.totalorder %v54, %v68
    %v70 = vstv %s66
    %vm71 = vcmp.eq.s32.totalorder %v56, %v70
    %vm72 = vmand %vm69, %vm71
    %vm73 = vmor %vm65, %vm72
    %s74 = sld [smem:[#allocation2 + $0x2]]
    %s75 = sld [smem:[#allocation2 + $0x16]]
    %v76 = vstv %s75
    %vm77 = vcmp.eq.s32.totalorder %v54, %v76
    %v78 = vstv %s74
    %vm79 = vcmp.eq.s32.totalorder %v56, %v78
    %vm80 = vmand %vm77, %vm79
    %vm81 = vmor %vm73, %vm80
    %s82 = sld [smem:[#allocation2 + $0x3]]
    %s83 = sld [smem:[#allocation2 + $0x17]]
    %v84 = vstv %s83
    %vm85 = vcmp.eq.s32.totalorder %v54, %v84
    %v86 = vstv %s82
    %vm87 = vcmp.eq.s32.totalorder %v56, %v86
    %vm88 = vmand %vm85, %vm87
    %vm89 = vmor %vm81, %vm88
    %s90 = sld [smem:[#allocation2 + $0x4]]
    %s91 = sld [smem:[#allocation2 + $0x18]]
    %v92 = vstv %s91
    %vm93 = vcmp.eq.s32.totalorder %v54, %v92
    %v94 = vstv %s90
    %vm95 = vcmp.eq.s32.totalorder %v56, %v94
    %vm96 = vmand %vm93, %vm95
    %vm97 = vmor %vm89, %vm96
    %s98 = sld [smem:[#allocation2 + $0x5]]
    %s99 = sld [smem:[#allocation2 + $0x19]]
    %v100 = vstv %s99
    %vm101 = vcmp.eq.s32.totalorder %v54, %v100
    %v102 = vstv %s98
    %vm103 = vcmp.eq.s32.totalorder %v56, %v102
    %vm104 = vmand %vm101, %vm103
    %vm105 = vmor %vm97, %vm104
    %s106 = sld [smem:[#allocation2 + $0x6]]
    %s107 = sld [smem:[#allocation2 + $0x1a]]
    %v108 = vstv %s107
    %vm109 = vcmp.eq.s32.totalorder %v54, %v108
    %v110 = vstv %s106
    %vm111 = vcmp.eq.s32.totalorder %v56, %v110
    %vm112 = vmand %vm109, %vm111
    %vm113 = vmor %vm105, %vm112
    %s114 = sld [smem:[#allocation2 + $0x7]]
    %s115 = sld [smem:[#allocation2 + $0x1b]]
    %v116 = vstv %s115
    %vm117 = vcmp.eq.s32.totalorder %v54, %v116
    %v118 = vstv %s114
    %vm119 = vcmp.eq.s32.totalorder %v56, %v118
    %vm120 = vmand %vm117, %vm119
    %vm121 = vmor %vm113, %vm120
    %s122 = sld [smem:[#allocation2 + $0x8]]
    %s123 = sld [smem:[#allocation2 + $0x1c]]
    %v124 = vstv %s123
    %vm125 = vcmp.eq.s32.totalorder %v54, %v124
    %v126 = vstv %s122
    %vm127 = vcmp.eq.s32.totalorder %v56, %v126
    %vm128 = vmand %vm125, %vm127
    %vm129 = vmor %vm121, %vm128
    %s130 = sld [smem:[#allocation2 + $0x9]]
    %s131 = sld [smem:[#allocation2 + $0x1d]]
    %v132 = vstv %s131
    %vm133 = vcmp.eq.s32.totalorder %v54, %v132
    %v134 = vstv %s130
    %vm135 = vcmp.eq.s32.totalorder %v56, %v134
    %vm136 = vmand %vm133, %vm135
    %vm137 = vmor %vm129, %vm136
    %s138 = sld [smem:[#allocation2 + $0xa]]
    %s139 = sld [smem:[#allocation2 + $0x1e]]
    %v140 = vstv %s139
    %vm141 = vcmp.eq.s32.totalorder %v54, %v140
    %v142 = vstv %s138
    %vm143 = vcmp.eq.s32.totalorder %v56, %v142
    %vm144 = vmand %vm141, %vm143
    %vm145 = vmor %vm137, %vm144
    %s146 = sld [smem:[#allocation2 + $0xb]]
    %s147 = sld [smem:[#allocation2 + $0x1f]]
    %v148 = vstv %s147
    %vm149 = vcmp.eq.s32.totalorder %v54, %v148
    %v150 = vstv %s146
    %vm151 = vcmp.eq.s32.totalorder %v56, %v150
    %vm152 = vmand %vm149, %vm151
    %vm153 = vmor %vm145, %vm152
    %s154 = sld [smem:[#allocation2 + $0xc]]
    %s155 = sld [smem:[#allocation2 + $0x20]]
    %v156 = vstv %s155
    %vm157 = vcmp.eq.s32.totalorder %v54, %v156
    %v158 = vstv %s154
    %vm159 = vcmp.eq.s32.totalorder %v56, %v158
    %vm160 = vmand %vm157, %vm159
    %vm161 = vmor %vm153, %vm160
    %s162 = sld [smem:[#allocation2 + $0xd]]
    %s163 = sld [smem:[#allocation2 + $0x21]]
    %v164 = vstv %s163
    %vm165 = vcmp.eq.s32.totalorder %v54, %v164
    %v166 = vstv %s162
    %vm167 = vcmp.eq.s32.totalorder %v56, %v166
    %vm168 = vmand %vm165, %vm167
    %vm169 = vmor %vm161, %vm168
    %s170 = sld [smem:[#allocation2 + $0xe]]
    %s171 = sld [smem:[#allocation2 + $0x22]]
    %v172 = vstv %s171
    %vm173 = vcmp.eq.s32.totalorder %v54, %v172
    %v174 = vstv %s170
    %vm175 = vcmp.eq.s32.totalorder %v56, %v174
    %vm176 = vmand %vm173, %vm175
    %vm177 = vmor %vm169, %vm176
    %s178 = sld [smem:[#allocation2 + $0xf]]
    %s179 = sld [smem:[#allocation2 + $0x23]]
    %v180 = vstv %s179
    %vm181 = vcmp.eq.s32.totalorder %v54, %v180
    %v182 = vstv %s178
    %vm183 = vcmp.eq.s32.totalorder %v56, %v182
    %vm184 = vmand %vm181, %vm183
    %vm185 = vmor %vm177, %vm184
    %s186 = sld [smem:[#allocation2 + $0x10]]
    %s187 = sld [smem:[#allocation2 + $0x24]]
    %v188 = vstv %s187
    %vm189 = vcmp.eq.s32.totalorder %v54, %v188
    %v190 = vstv %s186
    %vm191 = vcmp.eq.s32.totalorder %v56, %v190
    %vm192 = vmand %vm189, %vm191
    %vm193 = vmor %vm185, %vm192
    %s194 = sld [smem:[#allocation2 + $0x11]]
    %s195 = sld [smem:[#allocation2 + $0x25]]
    %v196 = vstv %s195
    %vm197 = vcmp.eq.s32.totalorder %v54, %v196
    %v198 = vstv %s194
    %vm199 = vcmp.eq.s32.totalorder %v56, %v198
    %vm200 = vmand %vm197, %vm199
    %vm201 = vmor %vm193, %vm200
    %s202 = sld [smem:[#allocation2 + $0x12]]
    %s203 = sld [smem:[#allocation2 + $0x26]]
    %v204 = vstv %s203
    %vm205 = vcmp.eq.s32.totalorder %v54, %v204
    %v206 = vstv %s202
    %vm207 = vcmp.eq.s32.totalorder %v56, %v206
    %vm208 = vmand %vm205, %vm207
    %vm209 = vmor %vm201, %vm208
    %s210 = sld [smem:[#allocation2 + $0x13]]
    %s211 = sld [smem:[#allocation2 + $0x27]]
    %v212 = vstv %s211
    %vm213 = vcmp.eq.s32.totalorder %v54, %v212
    %v214 = vstv %s210
    %vm215 = vcmp.eq.s32.totalorder %v56, %v214
    %vm216 = vmand %vm213, %vm215
    %vm217 = vmor %vm209, %vm216
    %v218 = vld [vmem:[#allocation7] sm:$0xff]
    %v219 = vld [vmem:[#allocation7 + $0x8] sm:$0xff]
    %vm220 = vcmask 130048
    %v222 = vsel %vm220, %v52, 0
    %224 = vmatprep.subr.mxu0 0.0
    %225 = vmatpush1.msra.mxu0 %v218
    %226 = vmatprep.subr.mxu0 0.0
    %227 = vmatpush1.msra.mxu0 %v219
    %228 = vmatprep.subr.mxu0 0.0
    %229 = vmatpush1.msra.mxu0 0.0
    %230 = vmatprep.subr.mxu0 0.0
    %231 = vmatpush1.msra.mxu0 0.0
    %232 = vmatprep.subr.mxu0 0.0
    %233 = vmatpush1.msra.mxu0 0.0
    %234 = vmatprep.subr.mxu0 0.0
    %235 = vmatpush1.msra.mxu0 0.0
    %236 = vmatprep.subr.mxu0 0.0
    %237 = vmatpush1.msra.mxu0 0.0
    %238 = vmatprep.subr.mxu0 0.0
    %239 = vmatpush1.msra.mxu0 0.0
    %240 = vmatprep.subr.mxu0 0.0
    %241 = vmatpush1.msra.mxu0 0.0
    %242 = vmatprep.subr.mxu0 0.0
    %243 = vmatpush1.msra.mxu0 0.0
    %244 = vmatprep.subr.mxu0 0.0
    %245 = vmatpush1.msra.mxu0 0.0
    %246 = vmatprep.subr.mxu0 0.0
    %247 = vmatpush1.msra.mxu0 0.0
    %248 = vmatprep.subr.mxu0 0.0
    %249 = vmatpush1.msra.mxu0 0.0
    %250 = vmatprep.subr.mxu0 0.0
    %251 = vmatpush1.msra.mxu0 0.0
    %252 = vmatprep.subr.mxu0 0.0
    %253 = vmatpush1.msra.mxu0 0.0
    %254 = vmatprep.subr.mxu0 0.0
    %255 = vmatpush1.msra.mxu0 0.0
    %256 = vmatprep.subr.mxu0 0.0
    %257 = vmatpush1.msra.mxu0 0.0
    %258 = vmatprep.subr.mxu0 0.0
    %259 = vmatpush1.msra.mxu0 0.0
    %260 = vmatprep.subr.mxu0 0.0
    %261 = vmatpush1.msra.mxu0 0.0
    %262 = vmatprep.subr.mxu0 0.0
    %263 = vmatpush1.msra.mxu0 0.0
    %264 = vmatprep.subr.mxu0 0.0
    %265 = vmatpush1.msra.mxu0 0.0
    %266 = vmatprep.subr.mxu0 0.0
    %267 = vmatpush1.msra.mxu0 0.0
    %268 = vmatprep.subr.mxu0 0.0
    %269 = vmatpush1.msra.mxu0 0.0
    %270 = vmatprep.subr.mxu0 0.0
    %271 = vmatpush1.msra.mxu0 0.0
    %272 = vmatprep.subr.mxu0 0.0
    %273 = vmatpush1.msra.mxu0 0.0
    %274 = vmatprep.subr.mxu0 0.0
    %275 = vmatpush1.msra.mxu0 0.0
    %276 = vmatprep.subr.mxu0 0.0
    %277 = vmatpush1.msra.mxu0 0.0
    %278 = vmatprep.subr.mxu0 0.0
    %279 = vmatpush1.msra.mxu0 0.0
    %280 = vmatprep.subr.mxu0 0.0
    %281 = vmatpush1.msra.mxu0 0.0
    %282 = vmatprep.subr.mxu0 0.0
    %283 = vmatpush1.msra.mxu0 0.0
    %284 = vmatprep.subr.mxu0 0.0
    %285 = vmatpush1.msra.mxu0 0.0
    %286 = vmatprep.subr.mxu0 0.0
    %287 = vmatpush1.msra.mxu0 0.0
    %288 = vmatprep.mubr.f32.mxu0 0.0
    %289 = vmatmul.mubr.f32.gmra.mrb[0].mxu0 %v222
    %v290 = vpop.f32.mrb[0].mxu0
    %v291 = vadd.f32 0.0, %v290
    %v292 = vpop.f32.mrb[0].mxu0
    %293 = vdwg.mxu0
    %295 = vrot.lane.b32.xlu0 %v291, 64
    %v296 = vpop.permute.xlu0 %295
    %298 = vxpose.xlu0.b32.start [1/16] %v296, 128
    %299 = vxpose.xlu0.b32.cont [2/16] 0.0, 128
    %300 = vxpose.xlu0.b32.cont [3/16] 0.0, 128
    %301 = vxpose.xlu0.b32.cont [4/16] 0.0, 128
    %302 = vxpose.xlu0.b32.cont [5/16] 0.0, 128
    %303 = vxpose.xlu0.b32.cont [6/16] 0.0, 128
    %304 = vxpose.xlu0.b32.cont [7/16] 0.0, 128
    %305 = vxpose.xlu0.b32.cont [8/16] 0.0, 128
    %306 = vxpose.xlu0.b32.cont [9/16] 0.0, 128
    %307 = vxpose.xlu0.b32.cont [10/16] 0.0, 128
    %308 = vxpose.xlu0.b32.cont [11/16] 0.0, 128
    %309 = vxpose.xlu0.b32.cont [12/16] 0.0, 128
    %310 = vxpose.xlu0.b32.cont [13/16] 0.0, 128
    %311 = vxpose.xlu0.b32.cont [14/16] 0.0, 128
    %312 = vxpose.xlu0.b32.cont [15/16] 0.0, 128
    %313 = vxpose.xlu0.b32.end [16/16] 0.0, 128
    %v314 = vpop.trf.xlu0
    %v315 = vpop.trf.xlu0
    %v316 = vpop.trf.xlu0
    %v317 = vpop.trf.xlu0
    %v318 = vpop.trf.xlu0
    %v319 = vpop.trf.xlu0
    %v320 = vpop.trf.xlu0
    %v321 = vpop.trf.xlu0
    %v322 = vpop.trf.xlu0
    %v323 = vpop.trf.xlu0
    %v324 = vpop.trf.xlu0
    %v325 = vpop.trf.xlu0
    %v326 = vpop.trf.xlu0
    %v327 = vpop.trf.xlu0
    %v328 = vpop.trf.xlu0
    %v329 = vpop.trf.xlu0
    %v330 = vld [vmem:[#allocation7 + $0x10] sm:$0x1]
    %331 = vset.pattern.permute.xlu0 66
    %332 = vperm.xlu0 %331, %v291
    %v333 = vpop.permute.xlu0 %332
    %v335 = vlaneseq
    %v336 = vshrl.u32 %v335, 7
    %v337 = vsub.s32 0, %v336
    %v338 = vrot.slane %v314, %v337
    %v339 = vadd.f32 %v333, %v338
    %vm340 = vcmp.gt.f32.partialorder %v339, 0.0
    %v341 = vmul.f32 %v339, 0.2
    %v342 = vsel %vm340, %v339, %v341
    %v343 = vsel %vm217, %v342, -1e+30
    %vm344 = vcmask 64512
    %v345 = vsel %vm344, %v343, -inf
    %346 = vmax.xlane.f32.xlu0 %v345
    %v347 = vpop.xlane.xlu0 %346
    %v348 = vsub.f32 %v343, %v347
    %v349 = vmul.f32 %v348, 1.442695
    %v350 = vpow.pop %v349
    %v351 = vsel %vm344, %v350, 0.0
    %352 = vadd.xlane.f32.xlu0 %v351
    %v353 = vpop.xlane.xlu0 %352
    %v354 = vrcp.pop %v353
    %v355 = vmul.f32 %v350, %v354
    %v357 = vsel %vm344, %v355, 0
    %359 = vmatprep.subr.mxu0 0.0
    %360 = vmatpush1.msra.mxu0 %v291
    %361 = vmatprep.subr.mxu0 0.0
    %362 = vmatpush1.msra.mxu0 0.0
    %363 = vmatprep.subr.mxu0 0.0
    %364 = vmatpush1.msra.mxu0 0.0
    %365 = vmatprep.subr.mxu0 0.0
    %366 = vmatpush1.msra.mxu0 0.0
    %367 = vmatprep.subr.mxu0 0.0
    %368 = vmatpush1.msra.mxu0 0.0
    %369 = vmatprep.subr.mxu0 0.0
    %370 = vmatpush1.msra.mxu0 0.0
    %371 = vmatprep.subr.mxu0 0.0
    %372 = vmatpush1.msra.mxu0 0.0
    %373 = vmatprep.subr.mxu0 0.0
    %374 = vmatpush1.msra.mxu0 0.0
    %375 = vmatprep.subr.mxu0 0.0
    %376 = vmatpush1.msra.mxu0 0.0
    %377 = vmatprep.subr.mxu0 0.0
    %378 = vmatpush1.msra.mxu0 0.0
    %379 = vmatprep.subr.mxu0 0.0
    %380 = vmatpush1.msra.mxu0 0.0
    %381 = vmatprep.subr.mxu0 0.0
    %382 = vmatpush1.msra.mxu0 0.0
    %383 = vmatprep.subr.mxu0 0.0
    %384 = vmatpush1.msra.mxu0 0.0
    %385 = vmatprep.subr.mxu0 0.0
    %386 = vmatpush1.msra.mxu0 0.0
    %387 = vmatprep.subr.mxu0 0.0
    %388 = vmatpush1.msra.mxu0 0.0
    %389 = vmatprep.subr.mxu0 0.0
    %390 = vmatpush1.msra.mxu0 0.0
    %391 = vmatprep.subr.mxu0 0.0
    %392 = vmatpush1.msra.mxu0 0.0
    %393 = vmatprep.subr.mxu0 0.0
    %394 = vmatpush1.msra.mxu0 0.0
    %395 = vmatprep.subr.mxu0 0.0
    %396 = vmatpush1.msra.mxu0 0.0
    %397 = vmatprep.subr.mxu0 0.0
    %398 = vmatpush1.msra.mxu0 0.0
    %399 = vmatprep.subr.mxu0 0.0
    %400 = vmatpush1.msra.mxu0 0.0
    %401 = vmatprep.subr.mxu0 0.0
    %402 = vmatpush1.msra.mxu0 0.0
    %403 = vmatprep.subr.mxu0 0.0
    %404 = vmatpush1.msra.mxu0 0.0
    %405 = vmatprep.subr.mxu0 0.0
    %406 = vmatpush1.msra.mxu0 0.0
    %407 = vmatprep.subr.mxu0 0.0
    %408 = vmatpush1.msra.mxu0 0.0
    %409 = vmatprep.subr.mxu0 0.0
    %410 = vmatpush1.msra.mxu0 0.0
    %411 = vmatprep.subr.mxu0 0.0
    %412 = vmatpush1.msra.mxu0 0.0
    %413 = vmatprep.subr.mxu0 0.0
    %414 = vmatpush1.msra.mxu0 0.0
    %415 = vmatprep.subr.mxu0 0.0
    %416 = vmatpush1.msra.mxu0 0.0
    %417 = vmatprep.subr.mxu0 0.0
    %418 = vmatpush1.msra.mxu0 0.0
    %419 = vmatprep.subr.mxu0 0.0
    %420 = vmatpush1.msra.mxu0 0.0
    %421 = vmatprep.subr.mxu0 0.0
    %422 = vmatpush1.msra.mxu0 0.0
    %423 = vmatprep.mubr.f32.mxu0 0.0
    %424 = vmatmul.mubr.f32.gmra.mrb[0].mxu0 %v357
    %v425 = vpop.f32.mrb[0].mxu0
    %v426 = vadd.f32 0.0, %v425
    %v427 = vpop.f32.mrb[0].mxu0
    %428 = vdwg.mxu0
    %429 = vset.pattern.permute.xlu0 67
    %430 = vperm.xlu0 %429, %v291
    %v431 = vpop.permute.xlu0 %430
    %v433 = vlaneseq
    %v434 = vshrl.u32 %v433, 7
    %v435 = vsub.s32 1, %v434
    %v436 = vrot.slane %v314, %v435
    %v437 = vadd.f32 %v431, %v436
    %vm438 = vcmp.gt.f32.partialorder %v437, 0.0
    %v439 = vmul.f32 %v437, 0.2
    %v440 = vsel %vm438, %v437, %v439
    %v441 = vsel %vm217, %v440, -1e+30
    %v442 = vsel %vm344, %v441, -inf
    %443 = vmax.xlane.f32.xlu0 %v442
    %v444 = vpop.xlane.xlu0 %443
    %v445 = vsub.f32 %v441, %v444
    %v446 = vmul.f32 %v445, 1.442695
    %v447 = vpow.pop %v446
    %v448 = vsel %vm344, %v447, 0.0
    %449 = vadd.xlane.f32.xlu0 %v448
    %v450 = vpop.xlane.xlu0 %449
    %v451 = vrcp.pop %v450
    %v452 = vmul.f32 %v447, %v451
    %453 = vrot.lane.b32.xlu0 %v291, 96
    %v454 = vpop.permute.xlu0 %453
    %v457 = vsel %vm344, %v452, 0
    %459 = vmatprep.subr.mxu0 0.0
    %460 = vmatpush1.msra.mxu0 %v454
    %461 = vmatprep.subr.mxu0 0.0
    %462 = vmatpush1.msra.mxu0 0.0
    %463 = vmatprep.subr.mxu0 0.0
    %464 = vmatpush1.msra.mxu0 0.0
    %465 = vmatprep.subr.mxu0 0.0
    %466 = vmatpush1.msra.mxu0 0.0
    %467 = vmatprep.subr.mxu0 0.0
    %468 = vmatpush1.msra.mxu0 0.0
    %469 = vmatprep.subr.mxu0 0.0
    %470 = vmatpush1.msra.mxu0 0.0
    %471 = vmatprep.subr.mxu0 0.0
    %472 = vmatpush1.msra.mxu0 0.0
    %473 = vmatprep.subr.mxu0 0.0
    %474 = vmatpush1.msra.mxu0 0.0
    %475 = vmatprep.subr.mxu0 0.0
    %476 = vmatpush1.msra.mxu0 0.0
    %477 = vmatprep.subr.mxu0 0.0
    %478 = vmatpush1.msra.mxu0 0.0
    %479 = vmatprep.subr.mxu0 0.0
    %480 = vmatpush1.msra.mxu0 0.0
    %481 = vmatprep.subr.mxu0 0.0
    %482 = vmatpush1.msra.mxu0 0.0
    %483 = vmatprep.subr.mxu0 0.0
    %484 = vmatpush1.msra.mxu0 0.0
    %485 = vmatprep.subr.mxu0 0.0
    %486 = vmatpush1.msra.mxu0 0.0
    %487 = vmatprep.subr.mxu0 0.0
    %488 = vmatpush1.msra.mxu0 0.0
    %489 = vmatprep.subr.mxu0 0.0
    %490 = vmatpush1.msra.mxu0 0.0
    %491 = vmatprep.subr.mxu0 0.0
    %492 = vmatpush1.msra.mxu0 0.0
    %493 = vmatprep.subr.mxu0 0.0
    %494 = vmatpush1.msra.mxu0 0.0
    %495 = vmatprep.subr.mxu0 0.0
    %496 = vmatpush1.msra.mxu0 0.0
    %497 = vmatprep.subr.mxu0 0.0
    %498 = vmatpush1.msra.mxu0 0.0
    %499 = vmatprep.subr.mxu0 0.0
    %500 = vmatpush1.msra.mxu0 0.0
    %501 = vmatprep.subr.mxu0 0.0
    %502 = vmatpush1.msra.mxu0 0.0
    %503 = vmatprep.subr.mxu0 0.0
    %504 = vmatpush1.msra.mxu0 0.0
    %505 = vmatprep.subr.mxu0 0.0
    %506 = vmatpush1.msra.mxu0 0.0
    %507 = vmatprep.subr.mxu0 0.0
    %508 = vmatpush1.msra.mxu0 0.0
    %509 = vmatprep.subr.mxu0 0.0
    %510 = vmatpush1.msra.mxu0 0.0
    %511 = vmatprep.subr.mxu0 0.0
    %512 = vmatpush1.msra.mxu0 0.0
    %513 = vmatprep.subr.mxu0 0.0
    %514 = vmatpush1.msra.mxu0 0.0
    %515 = vmatprep.subr.mxu0 0.0
    %516 = vmatpush1.msra.mxu0 0.0
    %517 = vmatprep.subr.mxu0 0.0
    %518 = vmatpush1.msra.mxu0 0.0
    %519 = vmatprep.subr.mxu0 0.0
    %520 = vmatpush1.msra.mxu0 0.0
    %521 = vmatprep.subr.mxu0 0.0
    %522 = vmatpush1.msra.mxu0 0.0
    %523 = vmatprep.mubr.f32.mxu0 0.0
    %524 = vmatmul.mubr.f32.gmra.mrb[0].mxu0 %v457
    %v525 = vpop.f32.mrb[0].mxu0
    %v526 = vadd.f32 0.0, %v525
    %v527 = vpop.f32.mrb[0].mxu0
    %528 = vdwg.mxu0
    %530 = vrot.lane.b32.xlu0 %v526, 32
    %v531 = vpop.permute.xlu0 %530
    %vm533 = vcmask 261120
    %v534 = vsel %vm533, %v426, %v531
    %v535 = vlaneseq
    %v536 = vshrl.u32 %v535, 7
    %v537 = vsub.s32 0, %v536
    %v538 = vrot.slane %v330, %v537
    %v539 = vadd.f32 %v534, %v538
    %v540 = vld [vmem:[#allocation7 + $0x18] sm:$0xff]
    %v541 = vld [vmem:[#allocation7 + $0x20] sm:$0xff]
    %v542 = vld [vmem:[#allocation7 + $0x28] sm:$0xff]
    %v543 = vld [vmem:[#allocation7 + $0x30] sm:$0xff]
    %v544 = vld [vmem:[#allocation7 + $0x38] sm:$0xff]
    %v545 = vld [vmem:[#allocation7 + $0x40] sm:$0xff]
    %v546 = vld [vmem:[#allocation7 + $0x48] sm:$0xff]
    %v547 = vld [vmem:[#allocation7 + $0x50] sm:$0xff]
    %vm548 = vcmask 523264
    %v550 = vsel %vm548, %v539, 0
    %552 = vmatprep.subr.mxu0 0.0
    %553 = vmatpush1.msra.mxu0 %v540
    %554 = vmatprep.subr.mxu0 0.0
    %555 = vmatpush1.msra.mxu0 %v541
    %556 = vmatprep.subr.mxu0 0.0
    %557 = vmatpush1.msra.mxu0 %v542
    %558 = vmatprep.subr.mxu0 0.0
    %559 = vmatpush1.msra.mxu0 %v543
    %560 = vmatprep.subr.mxu0 0.0
    %561 = vmatpush1.msra.mxu0 %v544
    %562 = vmatprep.subr.mxu0 0.0
    %563 = vmatpush1.msra.mxu0 %v545
    %564 = vmatprep.subr.mxu0 0.0
    %565 = vmatpush1.msra.mxu0 %v546
    %566 = vmatprep.subr.mxu0 0.0
    %567 = vmatpush1.msra.mxu0 %v547
    %568 = vmatprep.subr.mxu0 0.0
    %569 = vmatpush1.msra.mxu0 0.0
    %570 = vmatprep.subr.mxu0 0.0
    %571 = vmatpush1.msra.mxu0 0.0
    %572 = vmatprep.subr.mxu0 0.0
    %573 = vmatpush1.msra.mxu0 0.0
    %574 = vmatprep.subr.mxu0 0.0
    %575 = vmatpush1.msra.mxu0 0.0
    %576 = vmatprep.subr.mxu0 0.0
    %577 = vmatpush1.msra.mxu0 0.0
    %578 = vmatprep.subr.mxu0 0.0
    %579 = vmatpush1.msra.mxu0 0.0
    %580 = vmatprep.subr.mxu0 0.0
    %581 = vmatpush1.msra.mxu0 0.0
    %582 = vmatprep.subr.mxu0 0.0
    %583 = vmatpush1.msra.mxu0 0.0
    %584 = vmatprep.subr.mxu0 0.0
    %585 = vmatpush1.msra.mxu0 0.0
    %586 = vmatprep.subr.mxu0 0.0
    %587 = vmatpush1.msra.mxu0 0.0
    %588 = vmatprep.subr.mxu0 0.0
    %589 = vmatpush1.msra.mxu0 0.0
    %590 = vmatprep.subr.mxu0 0.0
    %591 = vmatpush1.msra.mxu0 0.0
    %592 = vmatprep.subr.mxu0 0.0
    %593 = vmatpush1.msra.mxu0 0.0
    %594 = vmatprep.subr.mxu0 0.0
    %595 = vmatpush1.msra.mxu0 0.0
    %596 = vmatprep.subr.mxu0 0.0
    %597 = vmatpush1.msra.mxu0 0.0
    %598 = vmatprep.subr.mxu0 0.0
    %599 = vmatpush1.msra.mxu0 0.0
    %600 = vmatprep.subr.mxu0 0.0
    %601 = vmatpush1.msra.mxu0 0.0
    %602 = vmatprep.subr.mxu0 0.0
    %603 = vmatpush1.msra.mxu0 0.0
    %604 = vmatprep.subr.mxu0 0.0
    %605 = vmatpush1.msra.mxu0 0.0
    %606 = vmatprep.subr.mxu0 0.0
    %607 = vmatpush1.msra.mxu0 0.0
    %608 = vmatprep.subr.mxu0 0.0
    %609 = vmatpush1.msra.mxu0 0.0
    %610 = vmatprep.subr.mxu0 0.0
    %611 = vmatpush1.msra.mxu0 0.0
    %612 = vmatprep.subr.mxu0 0.0
    %613 = vmatpush1.msra.mxu0 0.0
    %614 = vmatprep.subr.mxu0 0.0
    %615 = vmatpush1.msra.mxu0 0.0
    %616 = vmatprep.mubr.f32.mxu0 0.0
    %617 = vmatmul.mubr.f32.gmra.mrb[0].mxu0 %v550
    %v618 = vpop.f32.mrb[0].mxu0
    %v619 = vadd.f32 0.0, %v618
    %v620 = vpop.f32.mrb[0].mxu0
    %621 = vdwg.mxu0
    %623 = vrot.lane.b32.xlu0 %v619, 64
    %v624 = vpop.permute.xlu0 %623
    %626 = vxpose.xlu0.b32.start [1/16] %v624, 128
    %627 = vxpose.xlu0.b32.cont [2/16] 0.0, 128
    %628 = vxpose.xlu0.b32.cont [3/16] 0.0, 128
    %629 = vxpose.xlu0.b32.cont [4/16] 0.0, 128
    %630 = vxpose.xlu0.b32.cont [5/16] 0.0, 128
    %631 = vxpose.xlu0.b32.cont [6/16] 0.0, 128
    %632 = vxpose.xlu0.b32.cont [7/16] 0.0, 128
    %633 = vxpose.xlu0.b32.cont [8/16] 0.0, 128
    %634 = vxpose.xlu0.b32.cont [9/16] 0.0, 128
    %635 = vxpose.xlu0.b32.cont [10/16] 0.0, 128
    %636 = vxpose.xlu0.b32.cont [11/16] 0.0, 128
    %637 = vxpose.xlu0.b32.cont [12/16] 0.0, 128
    %638 = vxpose.xlu0.b32.cont [13/16] 0.0, 128
    %639 = vxpose.xlu0.b32.cont [14/16] 0.0, 128
    %640 = vxpose.xlu0.b32.cont [15/16] 0.0, 128
    %641 = vxpose.xlu0.b32.end [16/16] 0.0, 128
    %v642 = vpop.trf.xlu0
    %v643 = vpop.trf.xlu0
    %v644 = vpop.trf.xlu0
    %v645 = vpop.trf.xlu0
    %v646 = vpop.trf.xlu0
    %v647 = vpop.trf.xlu0
    %v648 = vpop.trf.xlu0
    %v649 = vpop.trf.xlu0
    %v650 = vpop.trf.xlu0
    %v651 = vpop.trf.xlu0
    %v652 = vpop.trf.xlu0
    %v653 = vpop.trf.xlu0
    %v654 = vpop.trf.xlu0
    %v655 = vpop.trf.xlu0
    %v656 = vpop.trf.xlu0
    %v657 = vpop.trf.xlu0
    %658 = vset.pattern.permute.xlu0 65
    %659 = vperm.xlu0 %658, %v619
    %v660 = vpop.permute.xlu0 %659
    %v662 = vlaneseq
    %v663 = vshrl.u32 %v662, 7
    %v664 = vsub.s32 0, %v663
    %v665 = vrot.slane %v642, %v664
    %v666 = vadd.f32 %v660, %v665
    %vm667 = vcmp.gt.f32.partialorder %v666, 0.0
    %v668 = vmul.f32 %v666, 0.2
    %v669 = vsel %vm667, %v666, %v668
    %v670 = vsel %vm217, %v669, -1e+30
    %v671 = vsel %vm344, %v670, -inf
    %672 = vmax.xlane.f32.xlu0 %v671
    %v673 = vpop.xlane.xlu0 %672
    %v674 = vsub.f32 %v670, %v673
    %v675 = vmul.f32 %v674, 1.442695
    %v676 = vpow.pop %v675
    %v677 = vsel %vm344, %v676, 0.0
    %678 = vadd.xlane.f32.xlu0 %v677
    %v679 = vpop.xlane.xlu0 %678
    %v680 = vrcp.pop %v679
    %v681 = vmul.f32 %v676, %v680
    %v683 = vsel %vm344, %v681, 0
    %685 = vmatprep.subr.mxu0 0.0
    %686 = vmatpush1.msra.mxu0 %v619
    %687 = vmatprep.subr.mxu0 0.0
    %688 = vmatpush1.msra.mxu0 0.0
    %689 = vmatprep.subr.mxu0 0.0
    %690 = vmatpush1.msra.mxu0 0.0
    %691 = vmatprep.subr.mxu0 0.0
    %692 = vmatpush1.msra.mxu0 0.0
    %693 = vmatprep.subr.mxu0 0.0
    %694 = vmatpush1.msra.mxu0 0.0
    %695 = vmatprep.subr.mxu0 0.0
    %696 = vmatpush1.msra.mxu0 0.0
    %697 = vmatprep.subr.mxu0 0.0
    %698 = vmatpush1.msra.mxu0 0.0
    %699 = vmatprep.subr.mxu0 0.0
    %700 = vmatpush1.msra.mxu0 0.0
    %701 = vmatprep.subr.mxu0 0.0
    %702 = vmatpush1.msra.mxu0 0.0
    %703 = vmatprep.subr.mxu0 0.0
    %704 = vmatpush1.msra.mxu0 0.0
    %705 = vmatprep.subr.mxu0 0.0
    %706 = vmatpush1.msra.mxu0 0.0
    %707 = vmatprep.subr.mxu0 0.0
    %708 = vmatpush1.msra.mxu0 0.0
    %709 = vmatprep.subr.mxu0 0.0
    %710 = vmatpush1.msra.mxu0 0.0
    %711 = vmatprep.subr.mxu0 0.0
    %712 = vmatpush1.msra.mxu0 0.0
    %713 = vmatprep.subr.mxu0 0.0
    %714 = vmatpush1.msra.mxu0 0.0
    %715 = vmatprep.subr.mxu0 0.0
    %716 = vmatpush1.msra.mxu0 0.0
    %717 = vmatprep.subr.mxu0 0.0
    %718 = vmatpush1.msra.mxu0 0.0
    %719 = vmatprep.subr.mxu0 0.0
    %720 = vmatpush1.msra.mxu0 0.0
    %721 = vmatprep.subr.mxu0 0.0
    %722 = vmatpush1.msra.mxu0 0.0
    %723 = vmatprep.subr.mxu0 0.0
    %724 = vmatpush1.msra.mxu0 0.0
    %725 = vmatprep.subr.mxu0 0.0
    %726 = vmatpush1.msra.mxu0 0.0
    %727 = vmatprep.subr.mxu0 0.0
    %728 = vmatpush1.msra.mxu0 0.0
    %729 = vmatprep.subr.mxu0 0.0
    %730 = vmatpush1.msra.mxu0 0.0
    %731 = vmatprep.subr.mxu0 0.0
    %732 = vmatpush1.msra.mxu0 0.0
    %733 = vmatprep.subr.mxu0 0.0
    %734 = vmatpush1.msra.mxu0 0.0
    %735 = vmatprep.subr.mxu0 0.0
    %736 = vmatpush1.msra.mxu0 0.0
    %737 = vmatprep.subr.mxu0 0.0
    %738 = vmatpush1.msra.mxu0 0.0
    %739 = vmatprep.subr.mxu0 0.0
    %740 = vmatpush1.msra.mxu0 0.0
    %741 = vmatprep.subr.mxu0 0.0
    %742 = vmatpush1.msra.mxu0 0.0
    %743 = vmatprep.subr.mxu0 0.0
    %744 = vmatpush1.msra.mxu0 0.0
    %745 = vmatprep.subr.mxu0 0.0
    %746 = vmatpush1.msra.mxu0 0.0
    %747 = vmatprep.subr.mxu0 0.0
    %748 = vmatpush1.msra.mxu0 0.0
    %749 = vmatprep.mubr.f32.mxu0 0.0
    %750 = vmatmul.mubr.f32.gmra.mrb[0].mxu0 %v683
    %v751 = vpop.f32.mrb[0].mxu0
    %v752 = vadd.f32 0.0, %v751
    %v753 = vpop.f32.mrb[0].mxu0
    %754 = vdwg.mxu0
    %756 = vrot.lane.b32.xlu0 %v538, 64
    %v757 = vpop.permute.xlu0 %756
    %v759 = vadd.f32 %v752, %v757
    %v760 = vmax.f32 %v759, 0.0
    %762 = vrot.lane.b32.xlu0 %v760, 96
    %v763 = vpop.permute.xlu0 %762
    %768 = vrot.lane.b32.xlu0 %v540, 8
    %v769 = vpop.permute.xlu0 %768
    %770 = vrot.lane.b32.xlu0 %v541, 8
    %v771 = vpop.permute.xlu0 %770
    %772 = vrot.lane.b32.xlu0 %v542, 8
    %v773 = vpop.permute.xlu0 %772
    %774 = vrot.lane.b32.xlu0 %v543, 8
    %v775 = vpop.permute.xlu0 %774
    %v780 = vsel %vm533, %v763, 0
    %782 = vmatprep.subr.mxu0 0.0
    %783 = vmatpush1.msra.mxu0 %v769
    %784 = vmatprep.subr.mxu0 0.0
    %785 = vmatpush1.msra.mxu0 %v771
    %786 = vmatprep.subr.mxu0 0.0
    %787 = vmatpush1.msra.mxu0 %v773
    %788 = vmatprep.subr.mxu0 0.0
    %789 = vmatpush1.msra.mxu0 %v775
    %790 = vmatprep.subr.mxu0 0.0
    %791 = vmatpush1.msra.mxu0 0.0
    %792 = vmatprep.subr.mxu0 0.0
    %793 = vmatpush1.msra.mxu0 0.0
    %794 = vmatprep.subr.mxu0 0.0
    %795 = vmatpush1.msra.mxu0 0.0
    %796 = vmatprep.subr.mxu0 0.0
    %797 = vmatpush1.msra.mxu0 0.0
    %798 = vmatprep.subr.mxu0 0.0
    %799 = vmatpush1.msra.mxu0 0.0
    %800 = vmatprep.subr.mxu0 0.0
    %801 = vmatpush1.msra.mxu0 0.0
    %802 = vmatprep.subr.mxu0 0.0
    %803 = vmatpush1.msra.mxu0 0.0
    %804 = vmatprep.subr.mxu0 0.0
    %805 = vmatpush1.msra.mxu0 0.0
    %806 = vmatprep.subr.mxu0 0.0
    %807 = vmatpush1.msra.mxu0 0.0
    %808 = vmatprep.subr.mxu0 0.0
    %809 = vmatpush1.msra.mxu0 0.0
    %810 = vmatprep.subr.mxu0 0.0
    %811 = vmatpush1.msra.mxu0 0.0
    %812 = vmatprep.subr.mxu0 0.0
    %813 = vmatpush1.msra.mxu0 0.0
    %814 = vmatprep.subr.mxu0 0.0
    %815 = vmatpush1.msra.mxu0 0.0
    %816 = vmatprep.subr.mxu0 0.0
    %817 = vmatpush1.msra.mxu0 0.0
    %818 = vmatprep.subr.mxu0 0.0
    %819 = vmatpush1.msra.mxu0 0.0
    %820 = vmatprep.subr.mxu0 0.0
    %821 = vmatpush1.msra.mxu0 0.0
    %822 = vmatprep.subr.mxu0 0.0
    %823 = vmatpush1.msra.mxu0 0.0
    %824 = vmatprep.subr.mxu0 0.0
    %825 = vmatpush1.msra.mxu0 0.0
    %826 = vmatprep.subr.mxu0 0.0
    %827 = vmatpush1.msra.mxu0 0.0
    %828 = vmatprep.subr.mxu0 0.0
    %829 = vmatpush1.msra.mxu0 0.0
    %830 = vmatprep.subr.mxu0 0.0
    %831 = vmatpush1.msra.mxu0 0.0
    %832 = vmatprep.subr.mxu0 0.0
    %833 = vmatpush1.msra.mxu0 0.0
    %834 = vmatprep.subr.mxu0 0.0
    %835 = vmatpush1.msra.mxu0 0.0
    %836 = vmatprep.subr.mxu0 0.0
    %837 = vmatpush1.msra.mxu0 0.0
    %838 = vmatprep.subr.mxu0 0.0
    %839 = vmatpush1.msra.mxu0 0.0
    %840 = vmatprep.subr.mxu0 0.0
    %841 = vmatpush1.msra.mxu0 0.0
    %842 = vmatprep.subr.mxu0 0.0
    %843 = vmatpush1.msra.mxu0 0.0
    %844 = vmatprep.subr.mxu0 0.0
    %845 = vmatpush1.msra.mxu0 0.0
    %846 = vmatprep.mubr.f32.mxu0 0.0
    %847 = vmatmul.mubr.f32.gmra.mrb[0].mxu0 %v780
    %v848 = vpop.f32.mrb[0].mxu0
    %v849 = vadd.f32 0.0, %v848
    %v850 = vpop.f32.mrb[0].mxu0
    %851 = vdwg.mxu0
    %852 = vxpose.xlu0.b32.start [1/16] %v849, 128
    %853 = vxpose.xlu0.b32.cont [2/16] 0.0, 128
    %854 = vxpose.xlu0.b32.cont [3/16] 0.0, 128
    %855 = vxpose.xlu0.b32.cont [4/16] 0.0, 128
    %856 = vxpose.xlu0.b32.cont [5/16] 0.0, 128
    %857 = vxpose.xlu0.b32.cont [6/16] 0.0, 128
    %858 = vxpose.xlu0.b32.cont [7/16] 0.0, 128
    %859 = vxpose.xlu0.b32.cont [8/16] 0.0, 128
    %860 = vxpose.xlu0.b32.cont [9/16] 0.0, 128
    %861 = vxpose.xlu0.b32.cont [10/16] 0.0, 128
    %862 = vxpose.xlu0.b32.cont [11/16] 0.0, 128
    %863 = vxpose.xlu0.b32.cont [12/16] 0.0, 128
    %864 = vxpose.xlu0.b32.cont [13/16] 0.0, 128
    %865 = vxpose.xlu0.b32.cont [14/16] 0.0, 128
    %866 = vxpose.xlu0.b32.cont [15/16] 0.0, 128
    %867 = vxpose.xlu0.b32.end [16/16] 0.0, 128
    %v868 = vpop.trf.xlu0
    %v869 = vpop.trf.xlu0
    %v870 = vpop.trf.xlu0
    %v871 = vpop.trf.xlu0
    %v872 = vpop.trf.xlu0
    %v873 = vpop.trf.xlu0
    %v874 = vpop.trf.xlu0
    %v875 = vpop.trf.xlu0
    %v876 = vpop.trf.xlu0
    %v877 = vpop.trf.xlu0
    %v878 = vpop.trf.xlu0
    %v879 = vpop.trf.xlu0
    %v880 = vpop.trf.xlu0
    %v881 = vpop.trf.xlu0
    %v882 = vpop.trf.xlu0
    %v883 = vpop.trf.xlu0
    %vm884 = vcmask 57344
    %v885 = vsel %vm884, %v868, -inf
    %886 = vmax.xlane.f32.xlu0 %v885
    %v887 = vpop.xlane.xlu0 %886
    %v888 = vsub.f32 %v868, %v887
    %v889 = vmul.f32 %v888, 1.442695
    %v890 = vpow.pop %v889
    %v891 = vsel %vm884, %v890, 0.0
    %892 = vadd.xlane.f32.xlu0 %v891
    %v893 = vpop.xlane.xlu0 %892
    %v894 = vrcp.pop %v893
    %v895 = vmul.f32 %v890, %v894
    %v896 = vlaneseq
    %v897 = vshrl.u32 %v896, 7
    %v898 = vsub.s32 0, %v897
    %v899 = vrot.slane %v895, %v898
    %901 = vrot.lane.b32.xlu0 %v899, 32
    %v902 = vpop.permute.xlu0 %901
    %v904 = vsel %vm533, %v759, %v902
    %vm905 = vcmask 326656
    %906 = vst.msk [vmem:[#allocation9] sm:$0xff] %vm905, %v904
    // Predicated region
    $region26: #{tpu_custom_call.1} parent=1 // pred_check
      _
    $region27: #{tpu_custom_call.1} parent=1 // pred_check_branch
      %908 = sbr.rel (0) target = $region29
    $region28: #{tpu_custom_call.1} parent=1 // pred_region
      %s910 = ssub.s32 128, 128
      %911 = vsyncadd [#allocation4], %s910
      %s913 = sshll.u32 [#allocation9], 4
      %s914 = int_to_ptr.vmem [resolvable:$true] %s913
      %916 = dma.vmem_to_hbm [thread:$0]  %s914, 128, %s3, [#allocation4]
    $region29: #{tpu_custom_call.1} parent=1 // pred_fallthru
      _
    // Predicated region
    $region30: #{tpu_custom_call.1} parent=1 // pred_check
      _
    $region31: #{tpu_custom_call.1} parent=1 // pred_check_branch
      %918 = sbr.rel (0) target = $region33
    $region32: #{tpu_custom_call.1} parent=1 // pred_region
      %919 = dma.done [#allocation4], 128
    $region33: #{tpu_custom_call.1} parent=1 // pred_fallthru
      _
    %920 = vsyncpa [#allocation3], 1
    %921 = vsyncpa [#allocation8], 1
    %922 = vsyncpa [#allocation4], 1
    %923 = vsyncpa [#allocation5], 1

</llo_original>
